<compile_context>
chip_gen: v7x
topology: tpu7x:2x2x1
jax: 0.10.0
libtpu: 0.0.40
codegen_flags: <defaults>
</compile_context>

<pallas_src>
import functools
import numpy as np
import jax
import jax.numpy as jnp
from jax.experimental import pallas as pl
from jax.experimental.pallas import tpu as pltpu


def _round_up(x, m):
    return ((x + m - 1) // m) * m


# ---------------------------------------------------------------------------
# Fused forward kernel: one grid step == one (batch, time-tile) pair
# ---------------------------------------------------------------------------

def _fused_kernel(x_ref, w0_ref, b0_ref, wconv_ref, w1_ref, b1_ref,
                  wl_ref, bl_ref, wr_ref, br_ref,
                  out_ref, kp_scratch, *, ksize, t_tile, seq_len, n_latents):
    # x_ref: (T_ext, n_in) halo'd window, T_ext = t_tile + ksize - 1 (batch/tile dims squeezed)
    pad = ksize // 2
    t_ext = t_tile + 2 * pad
    ti = pl.program_id(1)

    # Core.features.linear0 over the extended window
    kp_ext = jnp.dot(x_ref[...], w0_ref[...],
                     preferred_element_type=jnp.float32) + b0_ref[...]       # (T_ext, n_kp)

    # Zero rows outside the true sequence [0, T): PyTorch Conv1d zero-pads the *post-linear0*
    # activations ('same' padding), so halo rows at sequence ends must be 0, not b0.
    g = ti * t_tile + jax.lax.broadcasted_iota(jnp.int32, (t_ext, 1), 0)     # global padded row
    valid = (g >= pad) & (g < seq_len + pad)
    kp_scratch[...] = jnp.where(valid, kp_ext, 0.0)                          # written once

    # im2col from VMEM scratch: K shifted windows concatenated on lanes, layout [k*n_kp + j]
    col = jnp.concatenate(
        [kp_scratch[pl.ds(k, t_tile), :] for k in range(ksize)], axis=1)     # (Tt, K*n_kp)

    # wavelet Conv1d (cross-correlation, bias=False) as one MXU matmul; columns are
    # kp-major / filt-minor, i.e. already PyTorch's (T, n_kp*n_filt) flattening order.
    wav = jnp.dot(col, wconv_ref[...], preferred_element_type=jnp.float32)   # (Tt, n_kp*n_filt)
    wav = jnp.maximum(wav, 0.0)                                              # relu_wavelets

    # Core.features.linear1 + ReLU   (n_core_layers=2)
    h = jnp.dot(wav, w1_ref[...], preferred_element_type=jnp.float32) + b1_ref[...]
    h = jnp.maximum(h, 0.0)                                                  # (Tt, n_med)

    # Core.features.latent + relu_latents
    lat = jnp.dot(h, wl_ref[...], preferred_element_type=jnp.float32) + bl_ref[...]
    lat = jnp.maximum(lat, 0.0)                                              # (Tt, n_latents)

    # Readout (n_animals=1, n_out_layers=1)
    y = jnp.dot(lat, wr_ref[...], preferred_element_type=jnp.float32) + br_ref[...]

    # Single lane-dense store: [latents | y_pred]
    out_ref[...] = jnp.concatenate([lat, y], axis=1)                         # (Tt, n_lat+n_out)


def keypoints_network_forward(params, x, *, kernel_size, time_tile=512):
    """x: (B, T, n_in) float32 -> (y_pred (B, T, n_out), latents (B, T, n_latents))."""
    B, T, n_in = x.shape
    n_kp = params["w0"].shape[1]
    n_filtkp = params["w1"].shape[0]          # n_kp * n_filt
    n_med = params["w1"].shape[1]
    n_latents = params["wl"].shape[1]
    n_out = params["wr"].shape[1]
    K = kernel_size
    pad = K // 2

    # Time tile: multiple of 8, no bigger than the (rounded) sequence.
    Tt = _round_up(min(time_tile, _round_up(T, 8)), 8)
    nt = pl.cdiv(T, Tt)
    T_pad = nt * Tt
    T_ext = Tt + 2 * pad
    n_cat = n_latents + n_out

    # Halo'd, tile-aligned windows of x (wrapper-side layout plumbing):
    # x_win[b, i] = zero-padded x[b, i*Tt - pad : i*Tt + Tt + pad]
    x_padded = jnp.pad(x, ((0, 0), (pad, (T_pad - T) + pad), (0, 0)))
    x_win = jnp.stack(
        [jax.lax.slice_in_dim(x_padded, i * Tt, i * Tt + T_ext, axis=1) for i in range(nt)],
        axis=1)                                                              # (B, nt, T_ext, n_in)

    kernel = functools.partial(_fused_kernel, ksize=K, t_tile=Tt, seq_len=T,
                               n_latents=n_latents)

    def wspec(shape):
        return pl.BlockSpec(shape, lambda b, t: (0,) * len(shape))

    out = pl.pallas_call(
        kernel,
        out_shape=jax.ShapeDtypeStruct((B, T_pad, n_cat), jnp.float32),
        grid=(B, nt),
        in_specs=[
            pl.BlockSpec((None, None, T_ext, n_in), lambda b, t: (b, t, 0, 0)),  # x windows
            wspec((n_in, n_kp)),       wspec((1, n_kp)),      # linear0
            wspec((K * n_kp, n_filtkp)),                      # conv-as-matmul weight
            wspec((n_filtkp, n_med)),  wspec((1, n_med)),     # linear1
            wspec((n_med, n_latents)), wspec((1, n_latents)),  # latent
            wspec((n_latents, n_out)), wspec((1, n_out)),     # readout
        ],
        out_specs=pl.BlockSpec((None, Tt, n_cat), lambda b, t: (b, t, 0)),
        scratch_shapes=[pltpu.VMEM((T_ext, n_kp), jnp.float32)],
        compiler_params=pltpu.CompilerParams(
            dimension_semantics=("parallel", "parallel"),
            vmem_limit_bytes=32 * 1024 * 1024),
    )(x_win, params["w0"], params["b0"], params["wconv"],
      params["w1"], params["b1"], params["wl"], params["bl"],
      params["wr"], params["br"])

    latents = out[:, :T, :n_latents]
    y_pred = out[:, :T, n_latents:]
    return y_pred, latents


# ---------------------------------------------------------------------------
# Parameter construction (deterministic, mirrors the PyTorch __init__ shapes)
# ---------------------------------------------------------------------------

def gabor_wavelet(sigma, f, ph, n_pts=201):
    x = np.linspace(0, 2 * np.pi, n_pts + 1)[:-1].astype("float32")
    xc = x - x.mean()
    cosine = np.cos(ph + f * xc)
    gaussian = np.exp(-(xc ** 2) / (2 * sigma ** 2))
    G = gaussian * cosine
    G = G / (G ** 2).sum() ** 0.5
    return G.astype("float32")


def build_conv_weight(wav_np, n_kp):
    """Block-diagonal conv weight: W[k*n_kp + j, j*n_filt + f] = wav[f, k]."""
    n_filt, K = wav_np.shape
    W = np.zeros((K, n_kp, n_kp, n_filt), np.float32)
    for j in range(n_kp):
        W[:, j, j, :] = wav_np.T                     # (K, n_filt)
    return W.reshape(K * n_kp, n_kp * n_filt)


def init_params(key, n_in, n_kp, n_filt, kernel_size, n_med, n_latents, n_out):
    ks = jax.random.split(key, 8)

    def lin(kw, kb, fan_in, fan_out):
        bound = 1.0 / np.sqrt(fan_in)
        w = jax.random.uniform(kw, (fan_in, fan_out), jnp.float32, -bound, bound)
        b = jax.random.uniform(kb, (1, fan_out), jnp.float32, -bound, bound)
        return w, b

    params = {}
    # Core.features.linear0 : Linear(n_in, n_kp)   (stored as (in, out))
    params["w0"], params["b0"] = lin(ks[0], ks[1], n_in, n_kp)
    # Core.features.wavelet0 : Conv1d(1, n_filt, kernel_size, bias=False), gabor init
    f = np.geomspace(1, 10, n_filt // 2).astype("float32")
    gw0 = gabor_wavelet(1, f[:, np.newaxis], 0, n_pts=kernel_size)
    gw1 = gabor_wavelet(1, f[:, np.newaxis], np.pi / 2, n_pts=kernel_size)
    wav_np = np.vstack((gw0, gw1)).astype("float32")                 # (n_filt, K)
    params["wav"] = jnp.asarray(wav_np)
    params["wconv"] = jnp.asarray(build_conv_weight(wav_np, n_kp))   # (K*n_kp, n_kp*n_filt)
    # Core.features.linear1 : Linear(n_kp*n_filt, n_med)
    params["w1"], params["b1"] = lin(ks[2], ks[3], n_kp * n_filt, n_med)
    # Core.features.latent  : Linear(n_med, n_latents)
    params["wl"], params["bl"] = lin(ks[4], ks[5], n_med, n_latents)
    # Readout.features.linear0 : Linear(n_latents, n_out)
    params["wr"], params["br"] = lin(ks[6], ks[7], n_latents, n_out)
    return params


# ---------------------------------------------------------------------------
# Pure-JAX reference replicating the PyTorch forward semantics
# ---------------------------------------------------------------------------

def reference_forward(params, x, *, n_kp, n_filt):
    B, T, n_in = x.shape
    K = params["wav"].shape[1]
    kp = x.reshape(-1, n_in) @ params["w0"] + params["b0"]
    series = kp.reshape(B, T, n_kp).transpose(0, 2, 1).reshape(B * n_kp, 1, T)
    wavw = params["wav"][:, None, :]                                 # (n_filt, 1, K)
    conv = jax.lax.conv_general_dilated(
        series, wavw, window_strides=(1,), padding=[(K // 2, K // 2)],
        dimension_numbers=("NCH", "OIH", "NCH"))                     # (B*n_kp, n_filt, T)
    out = conv.reshape(B, n_kp * n_filt, T).transpose(0, 2, 1).reshape(-1, n_kp * n_filt)
    out = jnp.maximum(out, 0.0)
    out = jnp.maximum(out @ params["w1"] + params["b1"], 0.0)
    lat = jnp.maximum(out @ params["wl"] + params["bl"], 0.0)
    lat = lat.reshape(B, T, -1)
    y = lat.reshape(-1, lat.shape[-1]) @ params["wr"] + params["br"]
    return y.reshape(B, T, -1), lat


# ---------------------------------------------------------------------------
# Main
# ---------------------------------------------------------------------------

if __name__ == "__main__":
    # Small shapes consistent with KeypointsNetwork(n_in=6, n_kp=None, n_filt=4, kernel_size=7,
    #   n_core_layers=2, n_latents=64, n_out_layers=1, n_out=16, n_med=32, n_animals=1).
    # T=64 with time_tile=32 exercises two time tiles + the interior halo seam.
    B, T = 2, 64
    n_in, n_filt, kernel_size = 6, 4, 7
    n_kp = n_in                                # n_kp=None -> n_kp = n_in
    n_med, n_latents, n_out = 32, 64, 16

    key = jax.random.PRNGKey(0)
    kx, kparams = jax.random.split(key)
    x = jax.random.normal(kx, (B, T, n_in), dtype=jnp.float32)
    params = init_params(kparams, n_in, n_kp, n_filt, kernel_size, n_med, n_latents, n_out)

    y_pred, latents = keypoints_network_forward(params, x, kernel_size=kernel_size,
                                                time_tile=32)
    jax.block_until_ready((y_pred, latents))

    y_ref, lat_ref = reference_forward(params, x, n_kp=n_kp, n_filt=n_filt)
    np.testing.assert_allclose(np.asarray(latents), np.asarray(lat_ref), rtol=1e-4, atol=1e-4)
    np.testing.assert_allclose(np.asarray(y_pred), np.asarray(y_ref), rtol=1e-4, atol=1e-4)

    print("KERNEL_OK")
</pallas_src>

<mosaic_0001>
module attributes {stable_mosaic.version = 11 : i64} {
  func.func @_fused_kernel(%arg0: i32, %arg1: i32, %arg2: memref<1x1x38x6xf32, #tpu.memory_space<vmem>>, %arg3: memref<6x6xf32, #tpu.memory_space<vmem>>, %arg4: memref<1x6xf32, #tpu.memory_space<vmem>>, %arg5: memref<42x24xf32, #tpu.memory_space<vmem>>, %arg6: memref<24x32xf32, #tpu.memory_space<vmem>>, %arg7: memref<1x32xf32, #tpu.memory_space<vmem>>, %arg8: memref<32x64xf32, #tpu.memory_space<vmem>>, %arg9: memref<1x64xf32, #tpu.memory_space<vmem>>, %arg10: memref<64x16xf32, #tpu.memory_space<vmem>>, %arg11: memref<1x16xf32, #tpu.memory_space<vmem>>, %arg12: memref<1x32x80xf32, #tpu.memory_space<vmem>>, %arg13: memref<38x6xf32, #tpu.memory_space<vmem>>) attributes {dimension_semantics = [#tpu.dimension_semantics<parallel>, #tpu.dimension_semantics<parallel>], iteration_bounds = array<i64: 2, 2>, scalar_prefetch = 0 : i64, scratch_operands = 1 : i64, tpu.core_type = #tpu.core_type<tc>, window_params = [{transform_indices = @transform_0, window_bounds = array<i64: 1, 1, 38, 6>}, {pipeline_mode = #tpu.pipeline_mode<synchronous>, transform_indices = @transform_1, window_bounds = array<i64: 6, 6>}, {pipeline_mode = #tpu.pipeline_mode<synchronous>, transform_indices = @transform_2, window_bounds = array<i64: 1, 6>}, {pipeline_mode = #tpu.pipeline_mode<synchronous>, transform_indices = @transform_3, window_bounds = array<i64: 42, 24>}, {pipeline_mode = #tpu.pipeline_mode<synchronous>, transform_indices = @transform_4, window_bounds = array<i64: 24, 32>}, {pipeline_mode = #tpu.pipeline_mode<synchronous>, transform_indices = @transform_5, window_bounds = array<i64: 1, 32>}, {pipeline_mode = #tpu.pipeline_mode<synchronous>, transform_indices = @transform_6, window_bounds = array<i64: 32, 64>}, {pipeline_mode = #tpu.pipeline_mode<synchronous>, transform_indices = @transform_7, window_bounds = array<i64: 1, 64>}, {pipeline_mode = #tpu.pipeline_mode<synchronous>, transform_indices = @transform_8, window_bounds = array<i64: 64, 16>}, {pipeline_mode = #tpu.pipeline_mode<synchronous>, transform_indices = @transform_9, window_bounds = array<i64: 1, 16>}, {transform_indices = @transform_10, window_bounds = array<i64: 1, 32, 80>}]} {
    %c0 = arith.constant 0 : index
    %c0_0 = arith.constant 0 : index
    %c0_1 = arith.constant 0 : index
    %c0_2 = arith.constant 0 : index
    %0 = vector.load %arg2[%c0, %c0_0, %c0_1, %c0_2] : memref<1x1x38x6xf32, #tpu.memory_space<vmem>>, vector<1x1x38x6xf32>
    %1 = vector.shape_cast %0 : vector<1x1x38x6xf32> to vector<38x6xf32>
    %c0_3 = arith.constant 0 : index
    %c0_4 = arith.constant 0 : index
    %2 = vector.load %arg3[%c0_3, %c0_4] : memref<6x6xf32, #tpu.memory_space<vmem>>, vector<6x6xf32>
    %cst = arith.constant dense<0.000000e+00> : vector<38x6xf32>
    %3 = tpu.matmul %1, %2, %cst {dimension_numbers = #tpu.dot_dimension_numbers<[1], [0], [0], [1], [0, 0, 1, 1], [], []>} : vector<38x6xf32>, vector<6x6xf32>, vector<38x6xf32> -> vector<38x6xf32>
    %c0_5 = arith.constant 0 : index
    %c0_6 = arith.constant 0 : index
    %4 = vector.load %arg4[%c0_5, %c0_6] : memref<1x6xf32, #tpu.memory_space<vmem>>, vector<1x6xf32>
    %5 = vector.broadcast %4 : vector<1x6xf32> to vector<38x6xf32>
    %6 = arith.addf %3, %5 : vector<38x6xf32>
    %c32_i32 = arith.constant 32 : i32
    %7 = arith.muli %arg1, %c32_i32 : i32
    %8 = tpu.iota {dimensions = array<i32: 0>} : vector<38x1xi32>
    %9 = vector.broadcast %7 : i32 to vector<38x1xi32>
    %10 = arith.addi %9, %8 : vector<38x1xi32>
    %c3_i32 = arith.constant 3 : i32
    %11 = vector.broadcast %c3_i32 : i32 to vector<38x1xi32>
    %12 = arith.cmpi sge, %10, %11 : vector<38x1xi32>
    %c67_i32 = arith.constant 67 : i32
    %13 = vector.broadcast %c67_i32 : i32 to vector<38x1xi32>
    %14 = arith.cmpi slt, %10, %13 : vector<38x1xi32>
    %15 = arith.andi %12, %14 : vector<38x1xi1>
    %cst_7 = arith.constant 0.000000e+00 : f32
    %16 = vector.shape_cast %15 : vector<38x1xi1> to vector<38x1xi1>
    %17 = vector.broadcast %16 : vector<38x1xi1> to vector<38x6xi1>
    %18 = vector.broadcast %cst_7 : f32 to vector<38x6xf32>
    %19 = arith.select %17, %6, %18 : vector<38x6xi1>, vector<38x6xf32>
    %c0_8 = arith.constant 0 : index
    %c0_9 = arith.constant 0 : index
    %20 = vector.load %arg13[%c0_8, %c0_9] : memref<38x6xf32, #tpu.memory_space<vmem>>, vector<38x6xf32>
    tpu.vector_store %arg13[%c0_8, %c0_9], %19 {strides = array<i32>} : memref<38x6xf32, #tpu.memory_space<vmem>>, vector<38x6xf32>,
    %c0_10 = arith.constant 0 : index
    %c0_11 = arith.constant 0 : index
    %21 = vector.load %arg13[%c0_10, %c0_11] : memref<38x6xf32, #tpu.memory_space<vmem>>, vector<32x6xf32>
    %c1 = arith.constant 1 : index
    %c0_12 = arith.constant 0 : index
    %22 = vector.load %arg13[%c1, %c0_12] : memref<38x6xf32, #tpu.memory_space<vmem>>, vector<32x6xf32>
    %c2 = arith.constant 2 : index
    %c0_13 = arith.constant 0 : index
    %23 = vector.load %arg13[%c2, %c0_13] : memref<38x6xf32, #tpu.memory_space<vmem>>, vector<32x6xf32>
    %c3 = arith.constant 3 : index
    %c0_14 = arith.constant 0 : index
    %24 = vector.load %arg13[%c3, %c0_14] : memref<38x6xf32, #tpu.memory_space<vmem>>, vector<32x6xf32>
    %c4 = arith.constant 4 : index
    %c0_15 = arith.constant 0 : index
    %25 = vector.load %arg13[%c4, %c0_15] : memref<38x6xf32, #tpu.memory_space<vmem>>, vector<32x6xf32>
    %c5 = arith.constant 5 : index
    %c0_16 = arith.constant 0 : index
    %26 = vector.load %arg13[%c5, %c0_16] : memref<38x6xf32, #tpu.memory_space<vmem>>, vector<32x6xf32>
    %c6 = arith.constant 6 : index
    %c0_17 = arith.constant 0 : index
    %27 = vector.load %arg13[%c6, %c0_17] : memref<38x6xf32, #tpu.memory_space<vmem>>, vector<32x6xf32>
    %28 = tpu.concatenate %21, %22, %23, %24, %25, %26, %27 in 1 : vector<32x6xf32>, vector<32x6xf32>, vector<32x6xf32>, vector<32x6xf32>, vector<32x6xf32>, vector<32x6xf32>, vector<32x6xf32> -> vector<32x42xf32>
    %c0_18 = arith.constant 0 : index
    %c0_19 = arith.constant 0 : index
    %29 = vector.load %arg5[%c0_18, %c0_19] : memref<42x24xf32, #tpu.memory_space<vmem>>, vector<42x24xf32>
    %cst_20 = arith.constant dense<0.000000e+00> : vector<32x24xf32>
    %30 = tpu.matmul %28, %29, %cst_20 {dimension_numbers = #tpu.dot_dimension_numbers<[1], [0], [0], [1], [0, 0, 1, 1], [], []>} : vector<32x42xf32>, vector<42x24xf32>, vector<32x24xf32> -> vector<32x24xf32>
    %cst_21 = arith.constant 0.000000e+00 : f32
    %31 = vector.broadcast %cst_21 : f32 to vector<32x24xf32>
    %32 = arith.maximumf %30, %31 : vector<32x24xf32>
    %c0_22 = arith.constant 0 : index
    %c0_23 = arith.constant 0 : index
    %33 = vector.load %arg6[%c0_22, %c0_23] : memref<24x32xf32, #tpu.memory_space<vmem>>, vector<24x32xf32>
    %cst_24 = arith.constant dense<0.000000e+00> : vector<32x32xf32>
    %34 = tpu.matmul %32, %33, %cst_24 {dimension_numbers = #tpu.dot_dimension_numbers<[1], [0], [0], [1], [0, 0, 1, 1], [], []>} : vector<32x24xf32>, vector<24x32xf32>, vector<32x32xf32> -> vector<32x32xf32>
    %c0_25 = arith.constant 0 : index
    %c0_26 = arith.constant 0 : index
    %35 = vector.load %arg7[%c0_25, %c0_26] : memref<1x32xf32, #tpu.memory_space<vmem>>, vector<1x32xf32>
    %36 = vector.broadcast %35 : vector<1x32xf32> to vector<32x32xf32>
    %37 = arith.addf %34, %36 : vector<32x32xf32>
    %cst_27 = arith.constant 0.000000e+00 : f32
    %38 = vector.broadcast %cst_27 : f32 to vector<32x32xf32>
    %39 = arith.maximumf %37, %38 : vector<32x32xf32>
    %c0_28 = arith.constant 0 : index
    %c0_29 = arith.constant 0 : index
    %40 = vector.load %arg8[%c0_28, %c0_29] : memref<32x64xf32, #tpu.memory_space<vmem>>, vector<32x64xf32>
    %cst_30 = arith.constant dense<0.000000e+00> : vector<32x64xf32>
    %41 = tpu.matmul %39, %40, %cst_30 {dimension_numbers = #tpu.dot_dimension_numbers<[1], [0], [0], [1], [0, 0, 1, 1], [], []>} : vector<32x32xf32>, vector<32x64xf32>, vector<32x64xf32> -> vector<32x64xf32>
    %c0_31 = arith.constant 0 : index
    %c0_32 = arith.constant 0 : index
    %42 = vector.load %arg9[%c0_31, %c0_32] : memref<1x64xf32, #tpu.memory_space<vmem>>, vector<1x64xf32>
    %43 = vector.broadcast %42 : vector<1x64xf32> to vector<32x64xf32>
    %44 = arith.addf %41, %43 : vector<32x64xf32>
    %cst_33 = arith.constant 0.000000e+00 : f32
    %45 = vector.broadcast %cst_33 : f32 to vector<32x64xf32>
    %46 = arith.maximumf %44, %45 : vector<32x64xf32>
    %c0_34 = arith.constant 0 : index
    %c0_35 = arith.constant 0 : index
    %47 = vector.load %arg10[%c0_34, %c0_35] : memref<64x16xf32, #tpu.memory_space<vmem>>, vector<64x16xf32>
    %cst_36 = arith.constant dense<0.000000e+00> : vector<32x16xf32>
    %48 = tpu.matmul %46, %47, %cst_36 {dimension_numbers = #tpu.dot_dimension_numbers<[1], [0], [0], [1], [0, 0, 1, 1], [], []>} : vector<32x64xf32>, vector<64x16xf32>, vector<32x16xf32> -> vector<32x16xf32>
    %c0_37 = arith.constant 0 : index
    %c0_38 = arith.constant 0 : index
    %49 = vector.load %arg11[%c0_37, %c0_38] : memref<1x16xf32, #tpu.memory_space<vmem>>, vector<1x16xf32>
    %50 = vector.broadcast %49 : vector<1x16xf32> to vector<32x16xf32>
    %51 = arith.addf %48, %50 : vector<32x16xf32>
    %52 = tpu.concatenate %46, %51 in 1 : vector<32x64xf32>, vector<32x16xf32> -> vector<32x80xf32>
    %c0_39 = arith.constant 0 : index
    %c0_40 = arith.constant 0 : index
    %c0_41 = arith.constant 0 : index
    %53 = vector.load %arg12[%c0_39, %c0_40, %c0_41] : memref<1x32x80xf32, #tpu.memory_space<vmem>>, vector<1x32x80xf32>
    %54 = vector.shape_cast %53 : vector<1x32x80xf32> to vector<32x80xf32>
    %55 = vector.shape_cast %52 : vector<32x80xf32> to vector<1x32x80xf32>
    tpu.vector_store %arg12[%c0_39, %c0_40, %c0_41], %55 {strides = array<i32>} : memref<1x32x80xf32, #tpu.memory_space<vmem>>, vector<1x32x80xf32>,
    return
  }
  func.func @transform_0(%arg0: i32, %arg1: i32) -> (i32, i32, i32, i32) {
    %c0_i32 = arith.constant 0 : i32
    %c0_i32_0 = arith.constant 0 : i32
    %c0_i32_1 = arith.constant 0 : i32
    return %arg0, %arg1, %c0_i32, %c0_i32_0 : i32, i32, i32, i32
  }
  func.func @transform_1(%arg0: i32, %arg1: i32) -> (i32, i32) {
    %c0_i32 = arith.constant 0 : i32
    %c0_i32_0 = arith.constant 0 : i32
    %c0_i32_1 = arith.constant 0 : i32
    return %c0_i32, %c0_i32_0 : i32, i32
  }
  func.func @transform_2(%arg0: i32, %arg1: i32) -> (i32, i32) {
    %c0_i32 = arith.constant 0 : i32
    %c0_i32_0 = arith.constant 0 : i32
    %c0_i32_1 = arith.constant 0 : i32
    return %c0_i32, %c0_i32_0 : i32, i32
  }
  func.func @transform_3(%arg0: i32, %arg1: i32) -> (i32, i32) {
    %c0_i32 = arith.constant 0 : i32
    %c0_i32_0 = arith.constant 0 : i32
    %c0_i32_1 = arith.constant 0 : i32
    return %c0_i32, %c0_i32_0 : i32, i32
  }
  func.func @transform_4(%arg0: i32, %arg1: i32) -> (i32, i32) {
    %c0_i32 = arith.constant 0 : i32
    %c0_i32_0 = arith.constant 0 : i32
    %c0_i32_1 = arith.constant 0 : i32
    return %c0_i32, %c0_i32_0 : i32, i32
  }
  func.func @transform_5(%arg0: i32, %arg1: i32) -> (i32, i32) {
    %c0_i32 = arith.constant 0 : i32
    %c0_i32_0 = arith.constant 0 : i32
    %c0_i32_1 = arith.constant 0 : i32
    return %c0_i32, %c0_i32_0 : i32, i32
  }
  func.func @transform_6(%arg0: i32, %arg1: i32) -> (i32, i32) {
    %c0_i32 = arith.constant 0 : i32
    %c0_i32_0 = arith.constant 0 : i32
    %c0_i32_1 = arith.constant 0 : i32
    return %c0_i32, %c0_i32_0 : i32, i32
  }
  func.func @transform_7(%arg0: i32, %arg1: i32) -> (i32, i32) {
    %c0_i32 = arith.constant 0 : i32
    %c0_i32_0 = arith.constant 0 : i32
    %c0_i32_1 = arith.constant 0 : i32
    return %c0_i32, %c0_i32_0 : i32, i32
  }
  func.func @transform_8(%arg0: i32, %arg1: i32) -> (i32, i32) {
    %c0_i32 = arith.constant 0 : i32
    %c0_i32_0 = arith.constant 0 : i32
    %c0_i32_1 = arith.constant 0 : i32
    return %c0_i32, %c0_i32_0 : i32, i32
  }
  func.func @transform_9(%arg0: i32, %arg1: i32) -> (i32, i32) {
    %c0_i32 = arith.constant 0 : i32
    %c0_i32_0 = arith.constant 0 : i32
    %c0_i32_1 = arith.constant 0 : i32
    return %c0_i32, %c0_i32_0 : i32, i32
  }
  func.func @transform_10(%arg0: i32, %arg1: i32) -> (i32, i32, i32) {
    %c0_i32 = arith.constant 0 : i32
    %c0_i32_0 = arith.constant 0 : i32
    return %arg0, %arg1, %c0_i32 : i32, i32, i32
  }
}

</mosaic_0001>

<llo_original>
// kernel: tpu_custom_call.1
$region0: #{tpu_custom_call.1}
  #allocation0 [shape = 'u32[]', space=smem, size = 0x4, offset = 0x4, fixed_abs, tag = 'smem constant byte address 0x4 - core index']
  #allocation1 [shape = 'u32[144,128]{1,0:T(1,128)}', space=vmem, size = 0x12000, scoped, tag = 'internal scratch']
  #allocation2 [shape = 'f32[38,6]{1,0:T(8,128)}', space=vmem, size = 0x5000, scoped, tag = 'scratch operand']
  %s0 = inlined_call_operand.vmem [shape: f32[2,2,38,6], index: 0, kind: input, shape index: {}]
  %s1 = inlined_call_operand.vmem [shape: f32[6,6], index: 1, kind: input, shape index: {}]
  %s2 = inlined_call_operand.vmem [shape: f32[1,6], index: 2, kind: input, shape index: {}]
  %s3 = inlined_call_operand.vmem [shape: f32[42,24], index: 3, kind: input, shape index: {}]
  %s4 = inlined_call_operand.vmem [shape: f32[24,32], index: 4, kind: input, shape index: {}]
  %s5 = inlined_call_operand.vmem [shape: f32[1,32], index: 5, kind: input, shape index: {}]
  %s6 = inlined_call_operand.vmem [shape: f32[32,64], index: 6, kind: input, shape index: {}]
  %s7 = inlined_call_operand.vmem [shape: f32[1,64], index: 7, kind: input, shape index: {}]
  %s8 = inlined_call_operand.vmem [shape: f32[64,16], index: 8, kind: input, shape index: {}]
  %s9 = inlined_call_operand.vmem [shape: f32[1,16], index: 9, kind: input, shape index: {}]
  %s10 = inlined_call_operand.hbm [shape: f32[2,64,80], index: 10, kind: output, shape index: {}]
  %s11 = sld [smem:[#allocation0]]
  $region73: #{tpu_custom_call.1} parent=0
    _
  %s13 = ssub.s32 1, %s11
  %s14 = scalar_select 0, %s13, %s11
  $region1: #{tpu_custom_call.1} parent=0
    #allocation3 [shape = 'u8[32768]{0}', space=vmem, size = 0x8000, scoped, tag = 'output window, operand 0']
    #allocation4 [shape = 's32[2]{0}', space=sflag, size = 0x8, scoped, tag = 'scoped memory for tpu_custom_call.1']
    %15 = vsyncpa [#allocation4], 0
    %s16 = scalar_lea.sflag [#allocation4], 1
    %17 = vsyncpa %s16, 0
    loop: start=0, step=1, limit=6
    $region2: #{tpu_custom_call.1} parent=1 // loop_pre_header
      _
    $region3: #{tpu_custom_call.1} parent=1 // loop_header
      %s19 = sphi 0, %s23
      %p20 = scmp.ge.s32.totalorder %s19, 6
      %s26 = sphi 0, %s38
      %s27 = sphi 0, %s34
      %s28 = sphi 0, %s26
      %s29 = sphi 0, %s27
      %s30 = sphi 0, %s28
      %s31 = sphi 0, %s29
      %s43 = sphi 0, %s45
      %s46 = sphi 0, %s43
      %s47 = sphi 0, %s46
      %s63 = sphi 0, %s47
      %s67 = sphi 0, %s67
      %s69 = sphi 0, %s67
      %s70 = sphi 0, %s69
      %s84 = sphi 0, %s70
      %s88 = sphi 0, %s88
      %s90 = sphi 0, %s88
      %s91 = sphi 0, %s90
      %s105 = sphi 0, %s91
      %s109 = sphi 0, %s109
      %s111 = sphi 0, %s109
      %s112 = sphi 0, %s111
      %s126 = sphi 0, %s112
      %s130 = sphi 0, %s130
      %s132 = sphi 0, %s130
      %s133 = sphi 0, %s132
      %s147 = sphi 0, %s133
      %s151 = sphi 0, %s151
      %s153 = sphi 0, %s151
      %s154 = sphi 0, %s153
      %s168 = sphi 0, %s154
      %s172 = sphi 0, %s172
      %s174 = sphi 0, %s172
      %s175 = sphi 0, %s174
      %s189 = sphi 0, %s175
      %s193 = sphi 0, %s193
      %s195 = sphi 0, %s193
      %s196 = sphi 0, %s195
      %s210 = sphi 0, %s196
      %s214 = sphi 0, %s214
      %s216 = sphi 0, %s214
      %s217 = sphi 0, %s216
      %s231 = sphi 0, %s217
      %s235 = sphi 0, %s235
      %s237 = sphi 0, %s235
      %s238 = sphi 0, %s237
      %s252 = sphi 0, %s238
      %s260 = sphi 0, %s262
      %s263 = sphi 0, %s260
      %s264 = sphi 0, %s263
      %s280 = sphi 0, %s264
    $region4: #{tpu_custom_call.1} parent=1 // loop_header_branch
      %22 = sbr.rel (%p20) target = $region8
    $region5: #{tpu_custom_call.1} parent=1 // loop_body
      %s24 = ssub.s32 %s19, 1
      %s25 = ssub.s32 %s19, 2
      %s32 = sadd.s32 1, %s27
      %p33 = scmp.ge.s32.totalorder %s32, 2
      %s34 = scalar_select %p33, 0, %s32
      %s35 = sadd.s32 1, %s26
      %s36 = scalar_select %p33, %s35, %s26
      %p37 = scmp.ge.s32.totalorder %s36, 2
      %s38 = scalar_select %p37, 0, %s36
      %s39 = ssub.s32 %s26, %s38
      %s40 = ssub.s32 %s27, %s34
      %s41 = sor.u32 %s39, %s40
      %p42 = scmp.eq.s32.totalorder %s41, 0
      %s44 = sadd.s32 %s43, 1
      %s45 = scalar_select %p42, %s43, %s44
      %p48 = pneg %p42
      %p49 = scmp.eq.s32.totalorder %s19, 3
      %p50 = por %p48, %p49
      %p51 = scmp.ne.s32.totalorder %s43, %s46
      %p52 = scmp.eq.s32.totalorder %s19, 0
      %p53 = por %p51, %p52
      %p54 = scmp.ne.s32.totalorder %s43, %s46
      %p55 = scmp.eq.s32.totalorder %s24, 3
      %p56 = por %p54, %p55
      %p57 = scmp.ne.s32.totalorder %s46, %s47
      %p58 = scmp.eq.s32.totalorder %s24, 0
      %p59 = por %p57, %p58
      %p60 = scmp.ne.s32.totalorder %s46, %s47
      %p61 = scmp.eq.s32.totalorder %s25, 3
      %p62 = por %p60, %p61
      %p64 = scmp.ne.s32.totalorder %s47, %s63
      %p65 = scmp.eq.s32.totalorder %s25, 0
      %p66 = por %p64, %p65
      %s68 = sadd.s32 %s67, 1
      %p71 = scmp.eq.s32.totalorder %s19, 3
      %p72 = scmp.ne.s32.totalorder %s67, %s69
      %p73 = scmp.eq.s32.totalorder %s19, 0
      %p74 = por %p72, %p73
      %p75 = scmp.ne.s32.totalorder %s67, %s69
      %p76 = scmp.eq.s32.totalorder %s24, 3
      %p77 = por %p75, %p76
      %p78 = scmp.ne.s32.totalorder %s69, %s70
      %p79 = scmp.eq.s32.totalorder %s24, 0
      %p80 = por %p78, %p79
      %p81 = scmp.ne.s32.totalorder %s69, %s70
      %p82 = scmp.eq.s32.totalorder %s25, 3
      %p83 = por %p81, %p82
      %p85 = scmp.ne.s32.totalorder %s70, %s84
      %p86 = scmp.eq.s32.totalorder %s25, 0
      %p87 = por %p85, %p86
      %s89 = sadd.s32 %s88, 1
      %p92 = scmp.eq.s32.totalorder %s19, 3
      %p93 = scmp.ne.s32.totalorder %s88, %s90
      %p94 = scmp.eq.s32.totalorder %s19, 0
      %p95 = por %p93, %p94
      %p96 = scmp.ne.s32.totalorder %s88, %s90
      %p97 = scmp.eq.s32.totalorder %s24, 3
      %p98 = por %p96, %p97
      %p99 = scmp.ne.s32.totalorder %s90, %s91
      %p100 = scmp.eq.s32.totalorder %s24, 0
      %p101 = por %p99, %p100
      %p102 = scmp.ne.s32.totalorder %s90, %s91
      %p103 = scmp.eq.s32.totalorder %s25, 3
      %p104 = por %p102, %p103
      %p106 = scmp.ne.s32.totalorder %s91, %s105
      %p107 = scmp.eq.s32.totalorder %s25, 0
      %p108 = por %p106, %p107
      %s110 = sadd.s32 %s109, 1
      %p113 = scmp.eq.s32.totalorder %s19, 3
      %p114 = scmp.ne.s32.totalorder %s109, %s111
      %p115 = scmp.eq.s32.totalorder %s19, 0
      %p116 = por %p114, %p115
      %p117 = scmp.ne.s32.totalorder %s109, %s111
      %p118 = scmp.eq.s32.totalorder %s24, 3
      %p119 = por %p117, %p118
      %p120 = scmp.ne.s32.totalorder %s111, %s112
      %p121 = scmp.eq.s32.totalorder %s24, 0
      %p122 = por %p120, %p121
      %p123 = scmp.ne.s32.totalorder %s111, %s112
      %p124 = scmp.eq.s32.totalorder %s25, 3
      %p125 = por %p123, %p124
      %p127 = scmp.ne.s32.totalorder %s112, %s126
      %p128 = scmp.eq.s32.totalorder %s25, 0
      %p129 = por %p127, %p128
      %s131 = sadd.s32 %s130, 1
      %p134 = scmp.eq.s32.totalorder %s19, 3
      %p135 = scmp.ne.s32.totalorder %s130, %s132
      %p136 = scmp.eq.s32.totalorder %s19, 0
      %p137 = por %p135, %p136
      %p138 = scmp.ne.s32.totalorder %s130, %s132
      %p139 = scmp.eq.s32.totalorder %s24, 3
      %p140 = por %p138, %p139
      %p141 = scmp.ne.s32.totalorder %s132, %s133
      %p142 = scmp.eq.s32.totalorder %s24, 0
      %p143 = por %p141, %p142
      %p144 = scmp.ne.s32.totalorder %s132, %s133
      %p145 = scmp.eq.s32.totalorder %s25, 3
      %p146 = por %p144, %p145
      %p148 = scmp.ne.s32.totalorder %s133, %s147
      %p149 = scmp.eq.s32.totalorder %s25, 0
      %p150 = por %p148, %p149
      %s152 = sadd.s32 %s151, 1
      %p155 = scmp.eq.s32.totalorder %s19, 3
      %p156 = scmp.ne.s32.totalorder %s151, %s153
      %p157 = scmp.eq.s32.totalorder %s19, 0
      %p158 = por %p156, %p157
      %p159 = scmp.ne.s32.totalorder %s151, %s153
      %p160 = scmp.eq.s32.totalorder %s24, 3
      %p161 = por %p159, %p160
      %p162 = scmp.ne.s32.totalorder %s153, %s154
      %p163 = scmp.eq.s32.totalorder %s24, 0
      %p164 = por %p162, %p163
      %p165 = scmp.ne.s32.totalorder %s153, %s154
      %p166 = scmp.eq.s32.totalorder %s25, 3
      %p167 = por %p165, %p166
      %p169 = scmp.ne.s32.totalorder %s154, %s168
      %p170 = scmp.eq.s32.totalorder %s25, 0
      %p171 = por %p169, %p170
      %s173 = sadd.s32 %s172, 1
      %p176 = scmp.eq.s32.totalorder %s19, 3
      %p177 = scmp.ne.s32.totalorder %s172, %s174
      %p178 = scmp.eq.s32.totalorder %s19, 0
      %p179 = por %p177, %p178
      %p180 = scmp.ne.s32.totalorder %s172, %s174
      %p181 = scmp.eq.s32.totalorder %s24, 3
      %p182 = por %p180, %p181
      %p183 = scmp.ne.s32.totalorder %s174, %s175
      %p184 = scmp.eq.s32.totalorder %s24, 0
      %p185 = por %p183, %p184
      %p186 = scmp.ne.s32.totalorder %s174, %s175
      %p187 = scmp.eq.s32.totalorder %s25, 3
      %p188 = por %p186, %p187
      %p190 = scmp.ne.s32.totalorder %s175, %s189
      %p191 = scmp.eq.s32.totalorder %s25, 0
      %p192 = por %p190, %p191
      %s194 = sadd.s32 %s193, 1
      %p197 = scmp.eq.s32.totalorder %s19, 3
      %p198 = scmp.ne.s32.totalorder %s193, %s195
      %p199 = scmp.eq.s32.totalorder %s19, 0
      %p200 = por %p198, %p199
      %p201 = scmp.ne.s32.totalorder %s193, %s195
      %p202 = scmp.eq.s32.totalorder %s24, 3
      %p203 = por %p201, %p202
      %p204 = scmp.ne.s32.totalorder %s195, %s196
      %p205 = scmp.eq.s32.totalorder %s24, 0
      %p206 = por %p204, %p205
      %p207 = scmp.ne.s32.totalorder %s195, %s196
      %p208 = scmp.eq.s32.totalorder %s25, 3
      %p209 = por %p207, %p208
      %p211 = scmp.ne.s32.totalorder %s196, %s210
      %p212 = scmp.eq.s32.totalorder %s25, 0
      %p213 = por %p211, %p212
      %s215 = sadd.s32 %s214, 1
      %p218 = scmp.eq.s32.totalorder %s19, 3
      %p219 = scmp.ne.s32.totalorder %s214, %s216
      %p220 = scmp.eq.s32.totalorder %s19, 0
      %p221 = por %p219, %p220
      %p222 = scmp.ne.s32.totalorder %s214, %s216
      %p223 = scmp.eq.s32.totalorder %s24, 3
      %p224 = por %p222, %p223
      %p225 = scmp.ne.s32.totalorder %s216, %s217
      %p226 = scmp.eq.s32.totalorder %s24, 0
      %p227 = por %p225, %p226
      %p228 = scmp.ne.s32.totalorder %s216, %s217
      %p229 = scmp.eq.s32.totalorder %s25, 3
      %p230 = por %p228, %p229
      %p232 = scmp.ne.s32.totalorder %s217, %s231
      %p233 = scmp.eq.s32.totalorder %s25, 0
      %p234 = por %p232, %p233
      %s236 = sadd.s32 %s235, 1
      %p239 = scmp.eq.s32.totalorder %s19, 3
      %p240 = scmp.ne.s32.totalorder %s235, %s237
      %p241 = scmp.eq.s32.totalorder %s19, 0
      %p242 = por %p240, %p241
      %p243 = scmp.ne.s32.totalorder %s235, %s237
      %p244 = scmp.eq.s32.totalorder %s24, 3
      %p245 = por %p243, %p244
      %p246 = scmp.ne.s32.totalorder %s237, %s238
      %p247 = scmp.eq.s32.totalorder %s24, 0
      %p248 = por %p246, %p247
      %p249 = scmp.ne.s32.totalorder %s237, %s238
      %p250 = scmp.eq.s32.totalorder %s25, 3
      %p251 = por %p249, %p250
      %p253 = scmp.ne.s32.totalorder %s238, %s252
      %p254 = scmp.eq.s32.totalorder %s25, 0
      %p255 = por %p253, %p254
      %s256 = ssub.s32 %s26, %s38
      %s257 = ssub.s32 %s27, %s34
      %s258 = sor.u32 %s256, %s257
      %p259 = scmp.eq.s32.totalorder %s258, 0
      %s261 = sadd.s32 %s260, 1
      %s262 = scalar_select %p259, %s260, %s261
      %p265 = pneg %p259
      %p266 = scmp.eq.s32.totalorder %s19, 3
      %p267 = por %p265, %p266
      %p268 = scmp.ne.s32.totalorder %s260, %s263
      %p269 = scmp.eq.s32.totalorder %s19, 0
      %p270 = por %p268, %p269
      %p271 = scmp.ne.s32.totalorder %s260, %s263
      %p272 = scmp.eq.s32.totalorder %s24, 3
      %p273 = por %p271, %p272
      %p274 = scmp.ne.s32.totalorder %s263, %s264
      %p275 = scmp.eq.s32.totalorder %s24, 0
      %p276 = por %p274, %p275
      %p277 = scmp.ne.s32.totalorder %s263, %s264
      %p278 = scmp.eq.s32.totalorder %s25, 3
      %p279 = por %p277, %p278
      %p281 = scmp.ne.s32.totalorder %s264, %s280
      %p282 = scmp.eq.s32.totalorder %s25, 0
      %p283 = por %p281, %p282
      %p284 = scmp.le.s32.totalorder 1, %s19
      %p285 = scmp.lt.s32.totalorder %s19, 5
      %p286 = pnand %p284, %p285
      %p287 = pneg %p286
      // Predicated region
      $region9: #{tpu_custom_call.1} parent=5 // pred_check
        _
      $region10: #{tpu_custom_call.1} parent=5 // pred_check_branch
        %289 = sbr.rel (%p286) target = $region12
      $region11: #{tpu_custom_call.1} parent=5 // pred_region
        %s290 = ssub.s32 %s19, 1
        // Predicated region
        $region13: #{tpu_custom_call.1} parent=11 // pred_check
          %p291 = pneg %p80
        $region14: #{tpu_custom_call.1} parent=11 // pred_check_branch
          %293 = sbr.rel (%p291) target = $region16
        $region15: #{tpu_custom_call.1} parent=11 // pred_region
          _
        $region16: #{tpu_custom_call.1} parent=11 // pred_fallthru
          _
        // Predicated region
        $region17: #{tpu_custom_call.1} parent=11 // pred_check
          %p294 = pneg %p101
        $region18: #{tpu_custom_call.1} parent=11 // pred_check_branch
          %296 = sbr.rel (%p294) target = $region20
        $region19: #{tpu_custom_call.1} parent=11 // pred_region
          _
        $region20: #{tpu_custom_call.1} parent=11 // pred_fallthru
          _
        // Predicated region
        $region21: #{tpu_custom_call.1} parent=11 // pred_check
          %p297 = pneg %p122
        $region22: #{tpu_custom_call.1} parent=11 // pred_check_branch
          %299 = sbr.rel (%p297) target = $region24
        $region23: #{tpu_custom_call.1} parent=11 // pred_region
          _
        $region24: #{tpu_custom_call.1} parent=11 // pred_fallthru
          _
        // Predicated region
        $region25: #{tpu_custom_call.1} parent=11 // pred_check
          %p300 = pneg %p143
        $region26: #{tpu_custom_call.1} parent=11 // pred_check_branch
          %302 = sbr.rel (%p300) target = $region28
        $region27: #{tpu_custom_call.1} parent=11 // pred_region
          _
        $region28: #{tpu_custom_call.1} parent=11 // pred_fallthru
          _
        // Predicated region
        $region29: #{tpu_custom_call.1} parent=11 // pred_check
          %p303 = pneg %p164
        $region30: #{tpu_custom_call.1} parent=11 // pred_check_branch
          %305 = sbr.rel (%p303) target = $region32
        $region31: #{tpu_custom_call.1} parent=11 // pred_region
          _
        $region32: #{tpu_custom_call.1} parent=11 // pred_fallthru
          _
        // Predicated region
        $region33: #{tpu_custom_call.1} parent=11 // pred_check
          %p306 = pneg %p185
        $region34: #{tpu_custom_call.1} parent=11 // pred_check_branch
          %308 = sbr.rel (%p306) target = $region36
        $region35: #{tpu_custom_call.1} parent=11 // pred_region
          _
        $region36: #{tpu_custom_call.1} parent=11 // pred_fallthru
          _
        // Predicated region
        $region37: #{tpu_custom_call.1} parent=11 // pred_check
          %p309 = pneg %p206
        $region38: #{tpu_custom_call.1} parent=11 // pred_check_branch
          %311 = sbr.rel (%p309) target = $region40
        $region39: #{tpu_custom_call.1} parent=11 // pred_region
          _
        $region40: #{tpu_custom_call.1} parent=11 // pred_fallthru
          _
        // Predicated region
        $region41: #{tpu_custom_call.1} parent=11 // pred_check
          %p312 = pneg %p227
        $region42: #{tpu_custom_call.1} parent=11 // pred_check_branch
          %314 = sbr.rel (%p312) target = $region44
        $region43: #{tpu_custom_call.1} parent=11 // pred_region
          _
        $region44: #{tpu_custom_call.1} parent=11 // pred_fallthru
          _
        // Predicated region
        $region45: #{tpu_custom_call.1} parent=11 // pred_check
          %p315 = pneg %p248
        $region46: #{tpu_custom_call.1} parent=11 // pred_check_branch
          %317 = sbr.rel (%p315) target = $region48
        $region47: #{tpu_custom_call.1} parent=11 // pred_region
          _
        $region48: #{tpu_custom_call.1} parent=11 // pred_fallthru
          _
      $region12: #{tpu_custom_call.1} parent=5 // pred_fallthru
        _
      %p318 = scmp.lt.s32.totalorder %s19, 4
      // Predicated region
      $region49: #{tpu_custom_call.1} parent=5 // pred_check
        %p319 = pneg %p318
      $region50: #{tpu_custom_call.1} parent=5 // pred_check_branch
        %321 = sbr.rel (%p319) target = $region52
      $region51: #{tpu_custom_call.1} parent=5 // pred_region
        // Predicated region
        $region53: #{tpu_custom_call.1} parent=51 // pred_check
          %p322 = pneg %p53
        $region54: #{tpu_custom_call.1} parent=51 // pred_check_branch
          %324 = sbr.rel (%p322) target = $region56
        $region55: #{tpu_custom_call.1} parent=51 // pred_region
          %p325 = scmp.lt.s32.totalorder %s26, 1
          %s326 = scalar_select %p325, %s26, 1
          %p327 = scmp.lt.s32.totalorder %s27, 1
          %s328 = scalar_select %p327, %s27, 1
          %s329 = smul.addr %s328, 5
          %s330 = smul.addr %s326, 10
          %s331 = sadd.s32 %s329, %s330
          %s332 = smul.addr %s331, 8
          %s333 = scalar_lea.vmem %s0, %s332
        $region56: #{tpu_custom_call.1} parent=51 // pred_fallthru
          _
      $region52: #{tpu_custom_call.1} parent=5 // pred_fallthru
        _
      %p334 = scmp.le.s32.totalorder 1, %s19
      %p335 = scmp.lt.s32.totalorder %s19, 5
      %p336 = pnand %p334, %p335
      %p337 = pneg %p336
      // Predicated region
      $region57: #{tpu_custom_call.1} parent=5 // pred_check
        _
      $region58: #{tpu_custom_call.1} parent=5 // pred_check_branch
        %339 = sbr.rel (%p336) target = $region60
      $region59: #{tpu_custom_call.1} parent=5 // pred_region
        %s340 = ssub.s32 %s19, 1
        %p341 = scmp.lt.s32.totalorder %s28, 1
        %s342 = scalar_select %p341, %s28, 1
        %p343 = scmp.lt.s32.totalorder %s29, 1
        %s344 = scalar_select %p343, %s29, 1
        %s345 = smul.addr %s344, 5
        %s346 = smul.addr %s342, 10
        %s347 = sadd.s32 %s345, %s346
        %s348 = smul.addr %s347, 8
        %s349 = scalar_lea.vmem %s0, %s348
        %p350 = pneg %p59
        %p351 = pneg %p56
        %p352 = pneg %p80
        %p353 = pneg %p77
        %p354 = pneg %p101
        %p355 = pneg %p98
        %p356 = pneg %p122
        %p357 = pneg %p119
        %p358 = pneg %p143
        %p359 = pneg %p140
        %p360 = pneg %p164
        %p361 = pneg %p161
        %p362 = pneg %p185
        %p363 = pneg %p182
        %p364 = pneg %p206
        %p365 = pneg %p203
        %p366 = pneg %p227
        %p367 = pneg %p224
        %p368 = pneg %p248
        %p369 = pneg %p245
        %p370 = pneg %p276
        %p371 = pneg %p273
        %s372 = sand.u32 %s263, 1
        %s373 = scalar_lea.sflag [#allocation4], %s372
        %s374 = sand.u32 %s263, 1
        %s375 = smul.addr %s374, 32
        %s376 = scalar_lea.vmem [#allocation3], %s375
        %p377 = scmp.lt.s32.totalorder %s28, 1
        %s378 = scalar_select %p377, %s28, 1
        %p379 = scmp.lt.s32.totalorder %s29, 1
        %s380 = scalar_select %p379, %s29, 1
        %s381 = smul.addr %s380, 5
        %s382 = smul.addr %s378, 10
        %s383 = sadd.s32 %s381, %s382
        %s384 = smul.addr %s383, 8
        %s385 = scalar_lea.vmem %s0, %s384
        %s386 = smul.u32 4, %s29
        %v387 = vld [vmem:[%s385] sm:$0xff]
        %v388 = vld [vmem:[%s385 + $0x8] sm:$0xff]
        %v389 = vld [vmem:[%s385 + $0x10] sm:$0xff]
        %v390 = vld [vmem:[%s385 + $0x18] sm:$0xff]
        %v391 = vld [vmem:[%s385 + $0x20] sm:$0x3f]
        %v392 = vld [vmem:[%s1] sm:$0x3f]
        %v393 = vld [vmem:[%s2] sm:$0x1]
        %v395 = vlaneseq
        %v396 = vshrl.u32 %v395, 7
        %v397 = vsub.s32 0, %v396
        %v398 = vrot.slane %v393, %v397
        %vm400 = vcmask 48128
        %v402 = vsel %vm400, %v387, 0
        %v405 = vsel %vm400, %v388, 0
        %v408 = vsel %vm400, %v389, 0
        %v411 = vsel %vm400, %v390, 0
        %v414 = vsel %vm400, %v391, 0
        %vm416 = vcmask 1045504
        %v418 = vsel %vm416, %v392, 0
        %420 = vmatprep.subr.mxu0 0.0
        %421 = vmatpush1.msra.mxu0 %v418
        %422 = vmatprep.subr.mxu0 0.0
        %423 = vmatpush1.msra.mxu0 0.0
        %424 = vmatprep.subr.mxu0 0.0
        %425 = vmatpush1.msra.mxu0 0.0
        %426 = vmatprep.subr.mxu0 0.0
        %427 = vmatpush1.msra.mxu0 0.0
        %428 = vmatprep.subr.mxu0 0.0
        %429 = vmatpush1.msra.mxu0 0.0
        %430 = vmatprep.subr.mxu0 0.0
        %431 = vmatpush1.msra.mxu0 0.0
        %432 = vmatprep.subr.mxu0 0.0
        %433 = vmatpush1.msra.mxu0 0.0
        %434 = vmatprep.subr.mxu0 0.0
        %435 = vmatpush1.msra.mxu0 0.0
        %436 = vmatprep.subr.mxu0 0.0
        %437 = vmatpush1.msra.mxu0 0.0
        %438 = vmatprep.subr.mxu0 0.0
        %439 = vmatpush1.msra.mxu0 0.0
        %440 = vmatprep.subr.mxu0 0.0
        %441 = vmatpush1.msra.mxu0 0.0
        %442 = vmatprep.subr.mxu0 0.0
        %443 = vmatpush1.msra.mxu0 0.0
        %444 = vmatprep.subr.mxu0 0.0
        %445 = vmatpush1.msra.mxu0 0.0
        %446 = vmatprep.subr.mxu0 0.0
        %447 = vmatpush1.msra.mxu0 0.0
        %448 = vmatprep.subr.mxu0 0.0
        %449 = vmatpush1.msra.mxu0 0.0
        %450 = vmatprep.subr.mxu0 0.0
        %451 = vmatpush1.msra.mxu0 0.0
        %452 = vmatprep.subr.mxu0 0.0
        %453 = vmatpush1.msra.mxu0 0.0
        %454 = vmatprep.subr.mxu0 0.0
        %455 = vmatpush1.msra.mxu0 0.0
        %456 = vmatprep.subr.mxu0 0.0
        %457 = vmatpush1.msra.mxu0 0.0
        %458 = vmatprep.subr.mxu0 0.0
        %459 = vmatpush1.msra.mxu0 0.0
        %460 = vmatprep.subr.mxu0 0.0
        %461 = vmatpush1.msra.mxu0 0.0
        %462 = vmatprep.subr.mxu0 0.0
        %463 = vmatpush1.msra.mxu0 0.0
        %464 = vmatprep.subr.mxu0 0.0
        %465 = vmatpush1.msra.mxu0 0.0
        %466 = vmatprep.subr.mxu0 0.0
        %467 = vmatpush1.msra.mxu0 0.0
        %468 = vmatprep.subr.mxu0 0.0
        %469 = vmatpush1.msra.mxu0 0.0
        %470 = vmatprep.subr.mxu0 0.0
        %471 = vmatpush1.msra.mxu0 0.0
        %472 = vmatprep.subr.mxu0 0.0
        %473 = vmatpush1.msra.mxu0 0.0
        %474 = vmatprep.subr.mxu0 0.0
        %475 = vmatpush1.msra.mxu0 0.0
        %476 = vmatprep.subr.mxu0 0.0
        %477 = vmatpush1.msra.mxu0 0.0
        %478 = vmatprep.subr.mxu0 0.0
        %479 = vmatpush1.msra.mxu0 0.0
        %480 = vmatprep.subr.mxu0 0.0
        %481 = vmatpush1.msra.mxu0 0.0
        %482 = vmatprep.subr.mxu0 0.0
        %483 = vmatpush1.msra.mxu0 0.0
        %484 = vmatprep.mubr.f32.mxu0 0.0
        %485 = vmatmul.mubr.f32.gmra.mrb[0].mxu0 %v402
        %v486 = vpop.f32.mrb[0].mxu0
        %v487 = vadd.f32 %v398, %v486
        %v488 = vpop.f32.mrb[0].mxu0
        %489 = vmatprep.mubr.f32.mxu0 0.0
        %490 = vmatmul.mubr.f32.gmra.mrb[0].mxu0 %v405
        %v491 = vpop.f32.mrb[0].mxu0
        %v492 = vadd.f32 %v398, %v491
        %v493 = vpop.f32.mrb[0].mxu0
        %494 = vmatprep.mubr.f32.mxu0 0.0
        %495 = vmatmul.mubr.f32.gmra.mrb[0].mxu0 %v408
        %v496 = vpop.f32.mrb[0].mxu0
        %v497 = vadd.f32 %v398, %v496
        %v498 = vpop.f32.mrb[0].mxu0
        %499 = vmatprep.mubr.f32.mxu0 0.0
        %500 = vmatmul.mubr.f32.gmra.mrb[0].mxu0 %v411
        %v501 = vpop.f32.mrb[0].mxu0
        %v502 = vadd.f32 %v398, %v501
        %v503 = vpop.f32.mrb[0].mxu0
        %504 = vmatprep.mubr.f32.mxu0 0.0
        %505 = vmatmul.mubr.f32.gmra.mrb[0].mxu0 %v414
        %v506 = vpop.f32.mrb[0].mxu0
        %v507 = vadd.f32 %v398, %v506
        %v508 = vpop.f32.mrb[0].mxu0
        %509 = vdwg.mxu0
        %s510 = smul.u32 %s29, 32
        %v511 = vlaneseq
        %v512 = vshrl.u32 %v511, 7
        %v513 = vadd.s32 %v512, 8
        %v514 = vadd.s32 %v512, 16
        %v515 = vadd.s32 %v512, 24
        %v516 = vadd.s32 %v512, 32
        %v517 = vstv %s510
        %v518 = vadd.s32 %v517, %v512
        %v519 = vadd.s32 %v517, %v513
        %v520 = vadd.s32 %v517, %v514
        %v521 = vadd.s32 %v517, %v515
        %v522 = vadd.s32 %v517, %v516
        %vm523 = vcmp.ge.s32.totalorder %v518, 3
        %vm524 = vcmp.ge.s32.totalorder %v519, 3
        %vm525 = vcmp.ge.s32.totalorder %v520, 3
        %vm526 = vcmp.ge.s32.totalorder %v521, 3
        %vm527 = vcmp.ge.s32.totalorder %v522, 3
        %vm528 = vcmp.lt.s32.totalorder %v518, 67
        %vm529 = vcmp.lt.s32.totalorder %v519, 67
        %vm530 = vcmp.lt.s32.totalorder %v520, 67
        %vm531 = vcmp.lt.s32.totalorder %v521, 67
        %vm532 = vcmp.lt.s32.totalorder %v522, 67
        %vm533 = vmand %vm523, %vm528
        %vm534 = vmand %vm524, %vm529
        %vm535 = vmand %vm525, %vm530
        %vm536 = vmand %vm526, %vm531
        %vm537 = vmand %vm527, %vm532
        %v538 = vsel %vm533, 1, 0
        %v539 = vsel %vm534, 1, 0
        %v540 = vsel %vm535, 1, 0
        %v541 = vsel %vm536, 1, 0
        %v542 = vsel %vm537, 1, 0
        %vm543 = vcmp.eq.s32.totalorder %v538, 1
        %vm544 = vcmp.eq.s32.totalorder %v539, 1
        %vm545 = vcmp.eq.s32.totalorder %v540, 1
        %vm546 = vcmp.eq.s32.totalorder %v541, 1
        %vm547 = vcmp.eq.s32.totalorder %v542, 1
        %v548 = vsel %vm543, %v487, 0.0
        %v549 = vsel %vm544, %v492, 0.0
        %v550 = vsel %vm545, %v497, 0.0
        %v551 = vsel %vm546, %v502, 0.0
        %v552 = vsel %vm547, %v507, 0.0
        %553 = vst.msk [vmem:[#allocation2] sm:$0xff] %vm400, %v548
        %554 = vst.msk [vmem:[#allocation2 + $0x8] sm:$0xff] %vm400, %v549
        %555 = vst.msk [vmem:[#allocation2 + $0x10] sm:$0xff] %vm400, %v550
        %556 = vst.msk [vmem:[#allocation2 + $0x18] sm:$0xff] %vm400, %v551
        %vm557 = vcmask 46080
        %558 = vst.msk [vmem:[#allocation2 + $0x20] sm:$0x3f] %vm557, %v552
        %v559 = vld [vmem:[#allocation2] sm:$0xff]
        %v560 = vld [vmem:[#allocation2 + $0x8] sm:$0xff]
        %v561 = vld [vmem:[#allocation2 + $0x10] sm:$0xff]
        %v562 = vld [vmem:[#allocation2 + $0x18] sm:$0xff]
        %v563 = vld [vmem:[#allocation2 + $0x1] sm:$0xff]
        %v564 = vld [vmem:[#allocation2 + $0x9] sm:$0xff]
        %v565 = vld [vmem:[#allocation2 + $0x11] sm:$0xff]
        %v566 = vld [vmem:[#allocation2 + $0x19] sm:$0xff]
        %v567 = vld [vmem:[#allocation2 + $0x2] sm:$0xff]
        %v568 = vld [vmem:[#allocation2 + $0xa] sm:$0xff]
        %v569 = vld [vmem:[#allocation2 + $0x12] sm:$0xff]
        %v570 = vld [vmem:[#allocation2 + $0x1a] sm:$0xff]
        %v571 = vld [vmem:[#allocation2 + $0x3] sm:$0xff]
        %v572 = vld [vmem:[#allocation2 + $0xb] sm:$0xff]
        %v573 = vld [vmem:[#allocation2 + $0x13] sm:$0xff]
        %v574 = vld [vmem:[#allocation2 + $0x1b] sm:$0xff]
        %v575 = vld [vmem:[#allocation2 + $0x4] sm:$0xff]
        %v576 = vld [vmem:[#allocation2 + $0xc] sm:$0xff]
        %v577 = vld [vmem:[#allocation2 + $0x14] sm:$0xff]
        %v578 = vld [vmem:[#allocation2 + $0x1c] sm:$0xff]
        %v579 = vld [vmem:[#allocation2 + $0x5] sm:$0xff]
        %v580 = vld [vmem:[#allocation2 + $0xd] sm:$0xff]
        %v581 = vld [vmem:[#allocation2 + $0x15] sm:$0xff]
        %v582 = vld [vmem:[#allocation2 + $0x1d] sm:$0xff]
        %v583 = vld [vmem:[#allocation2 + $0x6] sm:$0xff]
        %v584 = vld [vmem:[#allocation2 + $0xe] sm:$0xff]
        %v585 = vld [vmem:[#allocation2 + $0x16] sm:$0xff]
        %v586 = vld [vmem:[#allocation2 + $0x1e] sm:$0xff]
        %591 = vrot.lane.b32.xlu0 %v563, 6
        %v592 = vpop.permute.xlu0 %591
        %593 = vrot.lane.b32.xlu0 %v564, 6
        %v594 = vpop.permute.xlu0 %593
        %595 = vrot.lane.b32.xlu0 %v565, 6
        %v596 = vpop.permute.xlu0 %595
        %597 = vrot.lane.b32.xlu0 %v566, 6
        %v598 = vpop.permute.xlu0 %597
        %607 = vrot.lane.b32.xlu0 %v567, 12
        %v608 = vpop.permute.xlu0 %607
        %609 = vrot.lane.b32.xlu0 %v568, 12
        %v610 = vpop.permute.xlu0 %609
        %611 = vrot.lane.b32.xlu0 %v569, 12
        %v612 = vpop.permute.xlu0 %611
        %613 = vrot.lane.b32.xlu0 %v570, 12
        %v614 = vpop.permute.xlu0 %613
        %623 = vrot.lane.b32.xlu0 %v571, 18
        %v624 = vpop.permute.xlu0 %623
        %625 = vrot.lane.b32.xlu0 %v572, 18
        %v626 = vpop.permute.xlu0 %625
        %627 = vrot.lane.b32.xlu0 %v573, 18
        %v628 = vpop.permute.xlu0 %627
        %629 = vrot.lane.b32.xlu0 %v574, 18
        %v630 = vpop.permute.xlu0 %629
        %639 = vrot.lane.b32.xlu0 %v575, 24
        %v640 = vpop.permute.xlu0 %639
        %641 = vrot.lane.b32.xlu0 %v576, 24
        %v642 = vpop.permute.xlu0 %641
        %643 = vrot.lane.b32.xlu0 %v577, 24
        %v644 = vpop.permute.xlu0 %643
        %645 = vrot.lane.b32.xlu0 %v578, 24
        %v646 = vpop.permute.xlu0 %645
        %655 = vrot.lane.b32.xlu0 %v579, 30
        %v656 = vpop.permute.xlu0 %655
        %657 = vrot.lane.b32.xlu0 %v580, 30
        %v658 = vpop.permute.xlu0 %657
        %659 = vrot.lane.b32.xlu0 %v581, 30
        %v660 = vpop.permute.xlu0 %659
        %661 = vrot.lane.b32.xlu0 %v582, 30
        %v662 = vpop.permute.xlu0 %661
        %671 = vrot.lane.b32.xlu0 %v583, 36
        %v672 = vpop.permute.xlu0 %671
        %673 = vrot.lane.b32.xlu0 %v584, 36
        %v674 = vpop.permute.xlu0 %673
        %675 = vrot.lane.b32.xlu0 %v585, 36
        %v676 = vpop.permute.xlu0 %675
        %677 = vrot.lane.b32.xlu0 %v586, 36
        %v678 = vpop.permute.xlu0 %677
        %v683 = vsel %vm400, %v559, %v592
        %v684 = vsel %vm400, %v560, %v594
        %v685 = vsel %vm400, %v561, %v596
        %v686 = vsel %vm400, %v562, %v598
        %vm687 = vcmask 97280
        %v688 = vsel %vm687, %v683, %v608
        %v689 = vsel %vm687, %v684, %v610
        %v690 = vsel %vm687, %v685, %v612
        %v691 = vsel %vm687, %v686, %v614
        %vm692 = vcmask 146432
        %v693 = vsel %vm692, %v688, %v624
        %v694 = vsel %vm692, %v689, %v626
        %v695 = vsel %vm692, %v690, %v628
        %v696 = vsel %vm692, %v691, %v630
        %vm697 = vcmask 195584
        %v698 = vsel %vm697, %v693, %v640
        %v699 = vsel %vm697, %v694, %v642
        %v700 = vsel %vm697, %v695, %v644
        %v701 = vsel %vm697, %v696, %v646
        %vm702 = vcmask 244736
        %v703 = vsel %vm702, %v698, %v656
        %v704 = vsel %vm702, %v699, %v658
        %v705 = vsel %vm702, %v700, %v660
        %v706 = vsel %vm702, %v701, %v662
        %vm707 = vcmask 293888
        %v708 = vsel %vm707, %v703, %v672
        %v709 = vsel %vm707, %v704, %v674
        %v710 = vsel %vm707, %v705, %v676
        %v711 = vsel %vm707, %v706, %v678
        %v712 = vld [vmem:[%s3] sm:$0xff]
        %v713 = vld [vmem:[%s3 + $0x8] sm:$0xff]
        %v714 = vld [vmem:[%s3 + $0x10] sm:$0xff]
        %v715 = vld [vmem:[%s3 + $0x18] sm:$0xff]
        %v716 = vld [vmem:[%s3 + $0x20] sm:$0xff]
        %v717 = vld [vmem:[%s3 + $0x28] sm:$0x3]
        %vm718 = vcmask 343040
        %v720 = vsel %vm718, %v708, 0
        %v723 = vsel %vm718, %v709, 0
        %v726 = vsel %vm718, %v710, 0
        %v729 = vsel %vm718, %v711, 0
        %vm731 = vcmask 1041408
        %v733 = vsel %vm731, %v717, 0
        %735 = vmatprep.subr.mxu0 0.0
        %736 = vmatpush1.msra.mxu0 %v712
        %737 = vmatprep.subr.mxu0 0.0
        %738 = vmatpush1.msra.mxu0 %v713
        %739 = vmatprep.subr.mxu0 0.0
        %740 = vmatpush1.msra.mxu0 %v714
        %741 = vmatprep.subr.mxu0 0.0
        %742 = vmatpush1.msra.mxu0 %v715
        %743 = vmatprep.subr.mxu0 0.0
        %744 = vmatpush1.msra.mxu0 %v716
        %745 = vmatprep.subr.mxu0 0.0
        %746 = vmatpush1.msra.mxu0 %v733
        %747 = vmatprep.subr.mxu0 0.0
        %748 = vmatpush1.msra.mxu0 0.0
        %749 = vmatprep.subr.mxu0 0.0
        %750 = vmatpush1.msra.mxu0 0.0
        %751 = vmatprep.subr.mxu0 0.0
        %752 = vmatpush1.msra.mxu0 0.0
        %753 = vmatprep.subr.mxu0 0.0
        %754 = vmatpush1.msra.mxu0 0.0
        %755 = vmatprep.subr.mxu0 0.0
        %756 = vmatpush1.msra.mxu0 0.0
        %757 = vmatprep.subr.mxu0 0.0
        %758 = vmatpush1.msra.mxu0 0.0
        %759 = vmatprep.subr.mxu0 0.0
        %760 = vmatpush1.msra.mxu0 0.0
        %761 = vmatprep.subr.mxu0 0.0
        %762 = vmatpush1.msra.mxu0 0.0
        %763 = vmatprep.subr.mxu0 0.0
        %764 = vmatpush1.msra.mxu0 0.0
        %765 = vmatprep.subr.mxu0 0.0
        %766 = vmatpush1.msra.mxu0 0.0
        %767 = vmatprep.subr.mxu0 0.0
        %768 = vmatpush1.msra.mxu0 0.0
        %769 = vmatprep.subr.mxu0 0.0
        %770 = vmatpush1.msra.mxu0 0.0
        %771 = vmatprep.subr.mxu0 0.0
        %772 = vmatpush1.msra.mxu0 0.0
        %773 = vmatprep.subr.mxu0 0.0
        %774 = vmatpush1.msra.mxu0 0.0
        %775 = vmatprep.subr.mxu0 0.0
        %776 = vmatpush1.msra.mxu0 0.0
        %777 = vmatprep.subr.mxu0 0.0
        %778 = vmatpush1.msra.mxu0 0.0
        %779 = vmatprep.subr.mxu0 0.0
        %780 = vmatpush1.msra.mxu0 0.0
        %781 = vmatprep.subr.mxu0 0.0
        %782 = vmatpush1.msra.mxu0 0.0
        %783 = vmatprep.subr.mxu0 0.0
        %784 = vmatpush1.msra.mxu0 0.0
        %785 = vmatprep.subr.mxu0 0.0
        %786 = vmatpush1.msra.mxu0 0.0
        %787 = vmatprep.subr.mxu0 0.0
        %788 = vmatpush1.msra.mxu0 0.0
        %789 = vmatprep.subr.mxu0 0.0
        %790 = vmatpush1.msra.mxu0 0.0
        %791 = vmatprep.subr.mxu0 0.0
        %792 = vmatpush1.msra.mxu0 0.0
        %793 = vmatprep.subr.mxu0 0.0
        %794 = vmatpush1.msra.mxu0 0.0
        %795 = vmatprep.subr.mxu0 0.0
        %796 = vmatpush1.msra.mxu0 0.0
        %797 = vmatprep.subr.mxu0 0.0
        %798 = vmatpush1.msra.mxu0 0.0
        %799 = vmatprep.mubr.f32.mxu0 0.0
        %800 = vmatmul.mubr.f32.gmra.mrb[0].mxu0 %v720
        %v801 = vpop.f32.mrb[0].mxu0
        %v802 = vadd.f32 0.0, %v801
        %v803 = vpop.f32.mrb[0].mxu0
        %804 = vmatprep.mubr.f32.mxu0 0.0
        %805 = vmatmul.mubr.f32.gmra.mrb[0].mxu0 %v723
        %v806 = vpop.f32.mrb[0].mxu0
        %v807 = vadd.f32 0.0, %v806
        %v808 = vpop.f32.mrb[0].mxu0
        %809 = vmatprep.mubr.f32.mxu0 0.0
        %810 = vmatmul.mubr.f32.gmra.mrb[0].mxu0 %v726
        %v811 = vpop.f32.mrb[0].mxu0
        %v812 = vadd.f32 0.0, %v811
        %v813 = vpop.f32.mrb[0].mxu0
        %814 = vmatprep.mubr.f32.mxu0 0.0
        %815 = vmatmul.mubr.f32.gmra.mrb[0].mxu0 %v729
        %v816 = vpop.f32.mrb[0].mxu0
        %v817 = vadd.f32 0.0, %v816
        %v818 = vpop.f32.mrb[0].mxu0
        %819 = vdwg.mxu0
        %v820 = vmax.f32 %v802, 0.0
        %v821 = vmax.f32 %v807, 0.0
        %v822 = vmax.f32 %v812, 0.0
        %v823 = vmax.f32 %v817, 0.0
        %v824 = vld [vmem:[%s4] sm:$0xff]
        %v825 = vld [vmem:[%s4 + $0x8] sm:$0xff]
        %v826 = vld [vmem:[%s4 + $0x10] sm:$0xff]
        %v827 = vld [vmem:[%s5] sm:$0x1]
        %v829 = vlaneseq
        %v830 = vshrl.u32 %v829, 7
        %v831 = vsub.s32 0, %v830
        %v832 = vrot.slane %v827, %v831
        %v835 = vsel %vm697, %v820, 0
        %v838 = vsel %vm697, %v821, 0
        %v841 = vsel %vm697, %v822, 0
        %v844 = vsel %vm697, %v823, 0
        %846 = vmatprep.subr.mxu0 0.0
        %847 = vmatpush1.msra.mxu0 %v824
        %848 = vmatprep.subr.mxu0 0.0
        %849 = vmatpush1.msra.mxu0 %v825
        %850 = vmatprep.subr.mxu0 0.0
        %851 = vmatpush1.msra.mxu0 %v826
        %852 = vmatprep.subr.mxu0 0.0
        %853 = vmatpush1.msra.mxu0 0.0
        %854 = vmatprep.subr.mxu0 0.0
        %855 = vmatpush1.msra.mxu0 0.0
        %856 = vmatprep.subr.mxu0 0.0
        %857 = vmatpush1.msra.mxu0 0.0
        %858 = vmatprep.subr.mxu0 0.0
        %859 = vmatpush1.msra.mxu0 0.0
        %860 = vmatprep.subr.mxu0 0.0
        %861 = vmatpush1.msra.mxu0 0.0
        %862 = vmatprep.subr.mxu0 0.0
        %863 = vmatpush1.msra.mxu0 0.0
        %864 = vmatprep.subr.mxu0 0.0
        %865 = vmatpush1.msra.mxu0 0.0
        %866 = vmatprep.subr.mxu0 0.0
        %867 = vmatpush1.msra.mxu0 0.0
        %868 = vmatprep.subr.mxu0 0.0
        %869 = vmatpush1.msra.mxu0 0.0
        %870 = vmatprep.subr.mxu0 0.0
        %871 = vmatpush1.msra.mxu0 0.0
        %872 = vmatprep.subr.mxu0 0.0
        %873 = vmatpush1.msra.mxu0 0.0
        %874 = vmatprep.subr.mxu0 0.0
        %875 = vmatpush1.msra.mxu0 0.0
        %876 = vmatprep.subr.mxu0 0.0
        %877 = vmatpush1.msra.mxu0 0.0
        %878 = vmatprep.subr.mxu0 0.0
        %879 = vmatpush1.msra.mxu0 0.0
        %880 = vmatprep.subr.mxu0 0.0
        %881 = vmatpush1.msra.mxu0 0.0
        %882 = vmatprep.subr.mxu0 0.0
        %883 = vmatpush1.msra.mxu0 0.0
        %884 = vmatprep.subr.mxu0 0.0
        %885 = vmatpush1.msra.mxu0 0.0
        %886 = vmatprep.subr.mxu0 0.0
        %887 = vmatpush1.msra.mxu0 0.0
        %888 = vmatprep.subr.mxu0 0.0
        %889 = vmatpush1.msra.mxu0 0.0
        %890 = vmatprep.subr.mxu0 0.0
        %891 = vmatpush1.msra.mxu0 0.0
        %892 = vmatprep.subr.mxu0 0.0
        %893 = vmatpush1.msra.mxu0 0.0
        %894 = vmatprep.subr.mxu0 0.0
        %895 = vmatpush1.msra.mxu0 0.0
        %896 = vmatprep.subr.mxu0 0.0
        %897 = vmatpush1.msra.mxu0 0.0
        %898 = vmatprep.subr.mxu0 0.0
        %899 = vmatpush1.msra.mxu0 0.0
        %900 = vmatprep.subr.mxu0 0.0
        %901 = vmatpush1.msra.mxu0 0.0
        %902 = vmatprep.subr.mxu0 0.0
        %903 = vmatpush1.msra.mxu0 0.0
        %904 = vmatprep.subr.mxu0 0.0
        %905 = vmatpush1.msra.mxu0 0.0
        %906 = vmatprep.subr.mxu0 0.0
        %907 = vmatpush1.msra.mxu0 0.0
        %908 = vmatprep.subr.mxu0 0.0
        %909 = vmatpush1.msra.mxu0 0.0
        %910 = vmatprep.mubr.f32.mxu0 0.0
        %911 = vmatmul.mubr.f32.gmra.mrb[0].mxu0 %v835
        %v912 = vpop.f32.mrb[0].mxu0
        %v913 = vadd.f32 %v832, %v912
        %v914 = vpop.f32.mrb[0].mxu0
        %915 = vmatprep.mubr.f32.mxu0 0.0
        %916 = vmatmul.mubr.f32.gmra.mrb[0].mxu0 %v838
        %v917 = vpop.f32.mrb[0].mxu0
        %v918 = vadd.f32 %v832, %v917
        %v919 = vpop.f32.mrb[0].mxu0
        %920 = vmatprep.mubr.f32.mxu0 0.0
        %921 = vmatmul.mubr.f32.gmra.mrb[0].mxu0 %v841
        %v922 = vpop.f32.mrb[0].mxu0
        %v923 = vadd.f32 %v832, %v922
        %v924 = vpop.f32.mrb[0].mxu0
        %925 = vmatprep.mubr.f32.mxu0 0.0
        %926 = vmatmul.mubr.f32.gmra.mrb[0].mxu0 %v844
        %v927 = vpop.f32.mrb[0].mxu0
        %v928 = vadd.f32 %v832, %v927
        %v929 = vpop.f32.mrb[0].mxu0
        %930 = vdwg.mxu0
        %v931 = vmax.f32 %v913, 0.0
        %v932 = vmax.f32 %v918, 0.0
        %v933 = vmax.f32 %v923, 0.0
        %v934 = vmax.f32 %v928, 0.0
        %v935 = vld [vmem:[%s6] sm:$0xff]
        %v936 = vld [vmem:[%s6 + $0x8] sm:$0xff]
        %v937 = vld [vmem:[%s6 + $0x10] sm:$0xff]
        %v938 = vld [vmem:[%s6 + $0x18] sm:$0xff]
        %v939 = vld [vmem:[%s7] sm:$0x1]
        %v941 = vlaneseq
        %v942 = vshrl.u32 %v941, 7
        %v943 = vsub.s32 0, %v942
        %v944 = vrot.slane %v939, %v943
        %vm946 = vcmask 261120
        %v948 = vsel %vm946, %v931, 0
        %v951 = vsel %vm946, %v932, 0
        %v954 = vsel %vm946, %v933, 0
        %v957 = vsel %vm946, %v934, 0
        %959 = vmatprep.subr.mxu0 0.0
        %960 = vmatpush1.msra.mxu0 %v935
        %961 = vmatprep.subr.mxu0 0.0
        %962 = vmatpush1.msra.mxu0 %v936
        %963 = vmatprep.subr.mxu0 0.0
        %964 = vmatpush1.msra.mxu0 %v937
        %965 = vmatprep.subr.mxu0 0.0
        %966 = vmatpush1.msra.mxu0 %v938
        %967 = vmatprep.subr.mxu0 0.0
        %968 = vmatpush1.msra.mxu0 0.0
        %969 = vmatprep.subr.mxu0 0.0
        %970 = vmatpush1.msra.mxu0 0.0
        %971 = vmatprep.subr.mxu0 0.0
        %972 = vmatpush1.msra.mxu0 0.0
        %973 = vmatprep.subr.mxu0 0.0
        %974 = vmatpush1.msra.mxu0 0.0
        %975 = vmatprep.subr.mxu0 0.0
        %976 = vmatpush1.msra.mxu0 0.0
        %977 = vmatprep.subr.mxu0 0.0
        %978 = vmatpush1.msra.mxu0 0.0
        %979 = vmatprep.subr.mxu0 0.0
        %980 = vmatpush1.msra.mxu0 0.0
        %981 = vmatprep.subr.mxu0 0.0
        %982 = vmatpush1.msra.mxu0 0.0
        %983 = vmatprep.subr.mxu0 0.0
        %984 = vmatpush1.msra.mxu0 0.0
        %985 = vmatprep.subr.mxu0 0.0
        %986 = vmatpush1.msra.mxu0 0.0
        %987 = vmatprep.subr.mxu0 0.0
        %988 = vmatpush1.msra.mxu0 0.0
        %989 = vmatprep.subr.mxu0 0.0
        %990 = vmatpush1.msra.mxu0 0.0
        %991 = vmatprep.subr.mxu0 0.0
        %992 = vmatpush1.msra.mxu0 0.0
        %993 = vmatprep.subr.mxu0 0.0
        %994 = vmatpush1.msra.mxu0 0.0
        %995 = vmatprep.subr.mxu0 0.0
        %996 = vmatpush1.msra.mxu0 0.0
        %997 = vmatprep.subr.mxu0 0.0
        %998 = vmatpush1.msra.mxu0 0.0
        %999 = vmatprep.subr.mxu0 0.0
        %1000 = vmatpush1.msra.mxu0 0.0
        %1001 = vmatprep.subr.mxu0 0.0
        %1002 = vmatpush1.msra.mxu0 0.0
        %1003 = vmatprep.subr.mxu0 0.0
        %1004 = vmatpush1.msra.mxu0 0.0
        %1005 = vmatprep.subr.mxu0 0.0
        %1006 = vmatpush1.msra.mxu0 0.0
        %1007 = vmatprep.subr.mxu0 0.0
        %1008 = vmatpush1.msra.mxu0 0.0
        %1009 = vmatprep.subr.mxu0 0.0
        %1010 = vmatpush1.msra.mxu0 0.0
        %1011 = vmatprep.subr.mxu0 0.0
        %1012 = vmatpush1.msra.mxu0 0.0
        %1013 = vmatprep.subr.mxu0 0.0
        %1014 = vmatpush1.msra.mxu0 0.0
        %1015 = vmatprep.subr.mxu0 0.0
        %1016 = vmatpush1.msra.mxu0 0.0
        %1017 = vmatprep.subr.mxu0 0.0
        %1018 = vmatpush1.msra.mxu0 0.0
        %1019 = vmatprep.subr.mxu0 0.0
        %1020 = vmatpush1.msra.mxu0 0.0
        %1021 = vmatprep.subr.mxu0 0.0
        %1022 = vmatpush1.msra.mxu0 0.0
        %1023 = vmatprep.mubr.f32.mxu0 0.0
        %1024 = vmatmul.mubr.f32.gmra.mrb[0].mxu0 %v948
        %v1025 = vpop.f32.mrb[0].mxu0
        %v1026 = vadd.f32 %v944, %v1025
        %v1027 = vpop.f32.mrb[0].mxu0
        %1028 = vmatprep.mubr.f32.mxu0 0.0
        %1029 = vmatmul.mubr.f32.gmra.mrb[0].mxu0 %v951
        %v1030 = vpop.f32.mrb[0].mxu0
        %v1031 = vadd.f32 %v944, %v1030
        %v1032 = vpop.f32.mrb[0].mxu0
        %1033 = vmatprep.mubr.f32.mxu0 0.0
        %1034 = vmatmul.mubr.f32.gmra.mrb[0].mxu0 %v954
        %v1035 = vpop.f32.mrb[0].mxu0
        %v1036 = vadd.f32 %v944, %v1035
        %v1037 = vpop.f32.mrb[0].mxu0
        %1038 = vmatprep.mubr.f32.mxu0 0.0
        %1039 = vmatmul.mubr.f32.gmra.mrb[0].mxu0 %v957
        %v1040 = vpop.f32.mrb[0].mxu0
        %v1041 = vadd.f32 %v944, %v1040
        %v1042 = vpop.f32.mrb[0].mxu0
        %1043 = vdwg.mxu0
        %v1044 = vmax.f32 %v1026, 0.0
        %v1045 = vmax.f32 %v1031, 0.0
        %v1046 = vmax.f32 %v1036, 0.0
        %v1047 = vmax.f32 %v1041, 0.0
        %v1048 = vld [vmem:[%s8] sm:$0xff]
        %v1049 = vld [vmem:[%s8 + $0x8] sm:$0xff]
        %v1050 = vld [vmem:[%s8 + $0x10] sm:$0xff]
        %v1051 = vld [vmem:[%s8 + $0x18] sm:$0xff]
        %v1052 = vld [vmem:[%s8 + $0x20] sm:$0xff]
        %v1053 = vld [vmem:[%s8 + $0x28] sm:$0xff]
        %v1054 = vld [vmem:[%s8 + $0x30] sm:$0xff]
        %v1055 = vld [vmem:[%s8 + $0x38] sm:$0xff]
        %v1056 = vld [vmem:[%s9] sm:$0x1]
        %v1058 = vlaneseq
        %v1059 = vshrl.u32 %v1058, 7
        %v1060 = vsub.s32 0, %v1059
        %v1061 = vrot.slane %v1056, %v1060
        %vm1063 = vcmask 523264
        %v1065 = vsel %vm1063, %v1044, 0
        %v1068 = vsel %vm1063, %v1045, 0
        %v1071 = vsel %vm1063, %v1046, 0
        %v1074 = vsel %vm1063, %v1047, 0
        %1076 = vmatprep.subr.mxu0 0.0
        %1077 = vmatpush1.msra.mxu0 %v1048
        %1078 = vmatprep.subr.mxu0 0.0
        %1079 = vmatpush1.msra.mxu0 %v1049
        %1080 = vmatprep.subr.mxu0 0.0
        %1081 = vmatpush1.msra.mxu0 %v1050
        %1082 = vmatprep.subr.mxu0 0.0
        %1083 = vmatpush1.msra.mxu0 %v1051
        %1084 = vmatprep.subr.mxu0 0.0
        %1085 = vmatpush1.msra.mxu0 %v1052
        %1086 = vmatprep.subr.mxu0 0.0
        %1087 = vmatpush1.msra.mxu0 %v1053
        %1088 = vmatprep.subr.mxu0 0.0
        %1089 = vmatpush1.msra.mxu0 %v1054
        %1090 = vmatprep.subr.mxu0 0.0
        %1091 = vmatpush1.msra.mxu0 %v1055
        %1092 = vmatprep.subr.mxu0 0.0
        %1093 = vmatpush1.msra.mxu0 0.0
        %1094 = vmatprep.subr.mxu0 0.0
        %1095 = vmatpush1.msra.mxu0 0.0
        %1096 = vmatprep.subr.mxu0 0.0
        %1097 = vmatpush1.msra.mxu0 0.0
        %1098 = vmatprep.subr.mxu0 0.0
        %1099 = vmatpush1.msra.mxu0 0.0
        %1100 = vmatprep.subr.mxu0 0.0
        %1101 = vmatpush1.msra.mxu0 0.0
        %1102 = vmatprep.subr.mxu0 0.0
        %1103 = vmatpush1.msra.mxu0 0.0
        %1104 = vmatprep.subr.mxu0 0.0
        %1105 = vmatpush1.msra.mxu0 0.0
        %1106 = vmatprep.subr.mxu0 0.0
        %1107 = vmatpush1.msra.mxu0 0.0
        %1108 = vmatprep.subr.mxu0 0.0
        %1109 = vmatpush1.msra.mxu0 0.0
        %1110 = vmatprep.subr.mxu0 0.0
        %1111 = vmatpush1.msra.mxu0 0.0
        %1112 = vmatprep.subr.mxu0 0.0
        %1113 = vmatpush1.msra.mxu0 0.0
        %1114 = vmatprep.subr.mxu0 0.0
        %1115 = vmatpush1.msra.mxu0 0.0
        %1116 = vmatprep.subr.mxu0 0.0
        %1117 = vmatpush1.msra.mxu0 0.0
        %1118 = vmatprep.subr.mxu0 0.0
        %1119 = vmatpush1.msra.mxu0 0.0
        %1120 = vmatprep.subr.mxu0 0.0
        %1121 = vmatpush1.msra.mxu0 0.0
        %1122 = vmatprep.subr.mxu0 0.0
        %1123 = vmatpush1.msra.mxu0 0.0
        %1124 = vmatprep.subr.mxu0 0.0
        %1125 = vmatpush1.msra.mxu0 0.0
        %1126 = vmatprep.subr.mxu0 0.0
        %1127 = vmatpush1.msra.mxu0 0.0
        %1128 = vmatprep.subr.mxu0 0.0
        %1129 = vmatpush1.msra.mxu0 0.0
        %1130 = vmatprep.subr.mxu0 0.0
        %1131 = vmatpush1.msra.mxu0 0.0
        %1132 = vmatprep.subr.mxu0 0.0
        %1133 = vmatpush1.msra.mxu0 0.0
        %1134 = vmatprep.subr.mxu0 0.0
        %1135 = vmatpush1.msra.mxu0 0.0
        %1136 = vmatprep.subr.mxu0 0.0
        %1137 = vmatpush1.msra.mxu0 0.0
        %1138 = vmatprep.subr.mxu0 0.0
        %1139 = vmatpush1.msra.mxu0 0.0
        %1140 = vmatprep.mubr.f32.mxu0 0.0
        %1141 = vmatmul.mubr.f32.gmra.mrb[0].mxu0 %v1065
        %v1142 = vpop.f32.mrb[0].mxu0
        %v1143 = vadd.f32 %v1061, %v1142
        %v1144 = vpop.f32.mrb[0].mxu0
        %1145 = vmatprep.mubr.f32.mxu0 0.0
        %1146 = vmatmul.mubr.f32.gmra.mrb[0].mxu0 %v1068
        %v1147 = vpop.f32.mrb[0].mxu0
        %v1148 = vadd.f32 %v1061, %v1147
        %v1149 = vpop.f32.mrb[0].mxu0
        %1150 = vmatprep.mubr.f32.mxu0 0.0
        %1151 = vmatmul.mubr.f32.gmra.mrb[0].mxu0 %v1071
        %v1152 = vpop.f32.mrb[0].mxu0
        %v1153 = vadd.f32 %v1061, %v1152
        %v1154 = vpop.f32.mrb[0].mxu0
        %1155 = vmatprep.mubr.f32.mxu0 0.0
        %1156 = vmatmul.mubr.f32.gmra.mrb[0].mxu0 %v1074
        %v1157 = vpop.f32.mrb[0].mxu0
        %v1158 = vadd.f32 %v1061, %v1157
        %v1159 = vpop.f32.mrb[0].mxu0
        %1160 = vdwg.mxu0
        %1165 = vrot.lane.b32.xlu0 %v1143, 64
        %v1166 = vpop.permute.xlu0 %1165
        %1167 = vrot.lane.b32.xlu0 %v1148, 64
        %v1168 = vpop.permute.xlu0 %1167
        %1169 = vrot.lane.b32.xlu0 %v1153, 64
        %v1170 = vpop.permute.xlu0 %1169
        %1171 = vrot.lane.b32.xlu0 %v1158, 64
        %v1172 = vpop.permute.xlu0 %1171
        %v1177 = vsel %vm1063, %v1044, %v1166
        %v1178 = vsel %vm1063, %v1045, %v1168
        %v1179 = vsel %vm1063, %v1046, %v1170
        %v1180 = vsel %vm1063, %v1047, %v1172
        %vm1181 = vcmask 654336
        %1182 = vst.msk [vmem:[%s376] sm:$0xff] %vm1181, %v1177
        %1183 = vst.msk [vmem:[%s376 + $0x8] sm:$0xff] %vm1181, %v1178
        %1184 = vst.msk [vmem:[%s376 + $0x10] sm:$0xff] %vm1181, %v1179
        %1185 = vst.msk [vmem:[%s376 + $0x18] sm:$0xff] %vm1181, %v1180
        %s1186 = sand.u32 %s263, 1
        %s1187 = scalar_lea.sflag [#allocation4], %s1186
        %s1188 = sand.u32 %s263, 1
        %s1189 = smul.addr %s1188, 32
        %s1190 = scalar_lea.vmem [#allocation3], %s1189
        // Predicated region
        $region61: #{tpu_custom_call.1} parent=59 // pred_check
          %p1191 = pneg %p273
        $region62: #{tpu_custom_call.1} parent=59 // pred_check_branch
          %1193 = sbr.rel (%p1191) target = $region64
        $region63: #{tpu_custom_call.1} parent=59 // pred_region
          %s1194 = smul.u32 4, %s29
          %s1196 = ssub.s32 512, 512
          %1197 = vsyncadd %s1187, %s1196
          %s1198 = smul.addr %s28, 8
          %s1199 = sadd.s32 %s1194, %s1198
          %s1200 = smul.addr %s1199, 128
          %s1201 = scalar_lea.hbm %s10, %s1200
          %s1202 = sshll.u32 %s1190, 4
          %s1203 = int_to_ptr.vmem [resolvable:$true] %s1202
          %1208 = dma.vmem_to_hbm [thread:$0]  %s1203, 512, %s1201, %s1187, 128, 128, 8
        $region64: #{tpu_custom_call.1} parent=59 // pred_fallthru
          _
      $region60: #{tpu_custom_call.1} parent=5 // pred_fallthru
        _
      %p1209 = scmp.le.s32.totalorder 2, %s19
      // Predicated region
      $region65: #{tpu_custom_call.1} parent=5 // pred_check
        %p1210 = pneg %p1209
      $region66: #{tpu_custom_call.1} parent=5 // pred_check_branch
        %1212 = sbr.rel (%p1210) target = $region68
      $region67: #{tpu_custom_call.1} parent=5 // pred_region
        %s1213 = ssub.s32 %s19, 2
        // Predicated region
        $region69: #{tpu_custom_call.1} parent=67 // pred_check
          %p1214 = pneg %p279
        $region70: #{tpu_custom_call.1} parent=67 // pred_check_branch
          %1216 = sbr.rel (%p1214) target = $region72
        $region71: #{tpu_custom_call.1} parent=67 // pred_region
          %s1217 = sand.u32 %s264, 1
          %s1218 = scalar_lea.sflag [#allocation4], %s1217
          %s1219 = sand.u32 %s264, 1
          %s1220 = smul.addr %s1219, 32
          %s1221 = scalar_lea.vmem [#allocation3], %s1220
          %1222 = dma.done %s1218, 512
        $region72: #{tpu_custom_call.1} parent=67 // pred_fallthru
          _
      $region68: #{tpu_custom_call.1} parent=5 // pred_fallthru
        _
    $region6: #{tpu_custom_call.1} parent=1 // loop_footer
      %s23 = sadd.s32 1, %s19
    $region7: #{tpu_custom_call.1} parent=1 // loop_footer_branch
      %18 = sbr.rel target = $region3
    $region8: #{tpu_custom_call.1} parent=1 // loop_exit
      _
    %1223 = vsyncpa [#allocation4], 1
    %s1224 = scalar_lea.sflag [#allocation4], 1
    %1225 = vsyncpa %s1224, 1

</llo_original>
